<compile_context>
chip_gen: v7x
topology: tpu7x:2x2x1
jax: 0.10.0
libtpu: 0.0.40
codegen_flags: <defaults>
</compile_context>

<pallas_src>
import jax
import jax.numpy as jnp
from jax.experimental import pallas as pl
from jax.experimental.pallas import tpu as pltpu


def _round_up(a, b):
    return ((a + b - 1) // b) * b


def _pick_tile(dim128, pref, min_tiles=1):
    """Largest multiple-of-128 tile that exactly divides dim128, is <= pref and
    (when achievable) leaves at least `min_tiles` tiles.

    Exact division means the wrapper never has to pad (i.e. rewrite) the
    operands beyond the unavoidable 128-alignment pad.
    """
    nb = dim128 // 128
    best = 128
    for d in range(1, nb + 1):
        if nb % d:
            continue
        t = d * 128
        if t > pref:
            continue
        if nb >= min_tiles and (nb // d) < min_tiles:
            continue
        best = max(best, t)
    return best


def _vmem_limit_bytes():
    """Generation-aware scoped-VMEM limit (v5e/v6e: 128 MiB phys, v7x: 64 MiB)."""
    try:
        cap = pltpu.get_tpu_info().vmem_capacity_bytes
    except Exception:
        cap = 64 * 1024 * 1024  # assume the smallest (v7x) if the query fails
    return int(min((3 * cap) // 4, 96 * 1024 * 1024))


def _make_l2_kernel(tk, x_resident):
    def kernel(x_ref, a_ref, y_ref, out_ref, acc_ref):
        """Grid = (M_tiles, K_tiles); K (matmul contraction) innermost.

        x_ref   : (B, N_pad) resident OR (B, TK) tiled    f32 flattened image
        a_ref   : (TK, TM)   f32 tile of the sensing matrix (the hot stream)
        y_ref   : (B, TM)    f32 tile of the measurements
        out_ref : (1, B, 1)  per-m-tile partial 0.5*||r||^2 (summed over m outside)
        acc_ref : (B, TM)    f32 scratch accumulator for the K sweep
        """
        k = pl.program_id(1)

        # Zero the matmul accumulator at the start of every K sweep.
        @pl.when(k == 0)
        def _():
            acc_ref[...] = jnp.zeros_like(acc_ref)

        if x_resident:
            start = pl.multiple_of(k * tk, tk)
            x_tile = x_ref[:, pl.ds(start, tk)]
        else:
            x_tile = x_ref[...]

        # MXU hot path: f32 partial of H(x) for this (M, K) tile.
        acc_ref[...] += jnp.dot(
            x_tile, a_ref[...], preferred_element_type=jnp.float32
        )

        # Last K step: residual vs. y, square, reduce over the measurement (lane)
        # axis, emit this m-tile's partial (no cross-m accumulation -> m parallel).
        @pl.when(k == pl.num_programs(1) - 1)
        def _():
            r = acc_ref[...] - y_ref[...]
            partial = 0.5 * jnp.sum(r * r, axis=1, keepdims=True)  # (B, 1)
            out_ref[...] = partial[None]                            # (1, B, 1)

    return kernel


def l2_fidelity(x, y, A, *, tm=1024, tk=2048,
                x_resident_max_bytes=4 * 1024 * 1024):
    """f(x)[b] = 0.5 * || vec(x[b]) @ A - y[b] ||_2^2  -> shape (B,).

    tm/tk: preferred measurement / contraction tile sizes (multiples of 128).
           Effective tiles are exact divisors of the 128-aligned dims, capped so
           m_tiles >= 2 (megacore) and shrunk to fit the per-generation VMEM
           budget.  x_resident_max_bytes bounds resident-x VMEM *including* its
           double buffering.
    """
    assert tm % 128 == 0 and tk % 128 == 0
    B = x.shape[0]
    x_flat = x.reshape(B, -1).astype(jnp.float32)   # no-op when already f32
    N = x_flat.shape[1]
    M = y.shape[1]
    assert A.shape == (N, M)
    A = A.astype(jnp.float32)                       # no-op when already f32
    y = y.astype(jnp.float32)

    # 128-aligned problem dims (the only source of padding).
    M128 = _round_up(M, 128)
    N128 = _round_up(N, 128)
    B_pad = _round_up(B, 8)                         # f32 sublane tile

    # Tile selection: grow tm (contiguous/lane dim of A) first for long DMA rows,
    # but keep >= 2 m-tiles when M allows it so the "parallel" m axis really
    # splits across v7x's 2 TensorCores.
    tm_eff = _pick_tile(M128, tm, min_tiles=2)
    tk_eff = _pick_tile(N128, tk)

    # x residency: keep the (small) image fully VMEM-resident so it is DMA'd
    # once, not re-streamed every m sweep.  Budget 2x (BlockSpec double-buffers).
    x_resident = (2 * B_pad * N128 * 4) <= x_resident_max_bytes

    vmem_limit = _vmem_limit_bytes()
    soft_budget = (3 * vmem_limit) // 4             # compiler headroom

    def vmem_estimate(tm_e, tk_e, x_res):
        a_buf = 2 * tk_e * tm_e * 4                         # A, double-buffered
        y_buf = 2 * B_pad * tm_e * 4                        # y, double-buffered
        acc = B_pad * tm_e * 4                              # f32 accumulator
        x_buf = 2 * B_pad * (N128 if x_res else tk_e) * 4   # x (2 bufs)
        return a_buf + y_buf + acc + x_buf + 4096           # + tiny output blocks

    # Shrink tiles (contraction first) if the blocks would not fit the budget.
    while vmem_estimate(tm_eff, tk_eff, x_resident) > soft_budget and tk_eff > 128:
        tk_eff = _pick_tile(N128, tk_eff // 2)
    while vmem_estimate(tm_eff, tk_eff, x_resident) > soft_budget and tm_eff > 128:
        tm_eff = _pick_tile(M128, tm_eff // 2, min_tiles=2)
    if vmem_estimate(tm_eff, tk_eff, x_resident) > soft_budget:
        x_resident = False

    m_tiles = M128 // tm_eff
    k_tiles = N128 // tk_eff

    # Zero-pad only when strictly necessary; padded rows/cols contribute exactly
    # 0 to the residual (A pad cols & y pad cols are both zero).
    if (B_pad, N128) != (B, N):
        x_flat = jnp.pad(x_flat, ((0, B_pad - B), (0, N128 - N)))
    if (N128, M128) != (N, M):
        A = jnp.pad(A, ((0, N128 - N), (0, M128 - M)))
    if (B_pad, M128) != (B, M):
        y = jnp.pad(y, ((0, B_pad - B), (0, M128 - M)))

    if x_resident:
        x_spec = pl.BlockSpec((B_pad, N128), lambda m, k: (0, 0))
    else:
        x_spec = pl.BlockSpec((B_pad, tk_eff), lambda m, k: (0, k))

    out = pl.pallas_call(
        _make_l2_kernel(tk_eff, x_resident),
        out_shape=jax.ShapeDtypeStruct((m_tiles, B_pad, 1), jnp.float32),
        grid_spec=pltpu.PrefetchScalarGridSpec(
            num_scalar_prefetch=0,
            grid=(m_tiles, k_tiles),
            in_specs=[
                x_spec,                                               # x (f32)
                pl.BlockSpec((tk_eff, tm_eff), lambda m, k: (k, m)),  # A (hot stream)
                pl.BlockSpec((B_pad, tm_eff), lambda m, k: (0, m)),   # y (f32)
            ],
            out_specs=pl.BlockSpec((1, B_pad, 1), lambda m, k: (m, 0, 0)),
            scratch_shapes=[pltpu.VMEM((B_pad, tm_eff), jnp.float32)],
        ),
        compiler_params=pltpu.CompilerParams(
            # m tiles are independent -> megacore-parallel on v7x (m_tiles >= 2
            # is enforced above whenever M permits).
            dimension_semantics=("parallel", "arbitrary"),
            vmem_limit_bytes=vmem_limit,
        ),
    )(x_flat, A, y)

    # Sum per-m-tile partials and drop batch padding.
    return jnp.sum(out, axis=0)[:B, 0]


if __name__ == "__main__":
    # Small deterministic example consistent with an imaging forward model.
    B, C, Hs, Ws = 2, 4, 16, 16          # x: NCHW
    N = C * Hs * Ws                      # 1024 flattened pixels
    M = 256                              # number of measurements

    key = jax.random.PRNGKey(0)
    kx, ka, ky = jax.random.split(key, 3)
    x = jax.random.normal(kx, (B, C, Hs, Ws), dtype=jnp.float32)
    A = jax.random.normal(ka, (N, M), dtype=jnp.float32) / jnp.sqrt(N)
    y = jax.random.normal(ky, (B, M), dtype=jnp.float32)

    out = jax.block_until_ready(l2_fidelity(x, y, A))

    # Pure-JAX f32 reference of the module's math: 0.5 * ||vec(x) @ A - y||^2.
    r_ref = x.reshape(B, -1) @ A - y
    ref = 0.5 * jnp.sum(r_ref * r_ref, axis=1)

    assert out.shape == (B,)
    assert jnp.allclose(out, ref, rtol=1e-2, atol=1e-2), (out, ref)
    print("KERNEL_OK")
</pallas_src>

<mosaic_0001>
module attributes {stable_mosaic.version = 11 : i64} {
  func.func @kernel(%arg0: i32, %arg1: i32, %arg2: memref<8x1024xf32, #tpu.memory_space<vmem>>, %arg3: memref<1024x128xf32, #tpu.memory_space<vmem>>, %arg4: memref<8x128xf32, #tpu.memory_space<vmem>>, %arg5: memref<1x8x1xf32, #tpu.memory_space<vmem>>, %arg6: memref<8x128xf32, #tpu.memory_space<vmem>>) attributes {dimension_semantics = [#tpu.dimension_semantics<parallel>, #tpu.dimension_semantics<arbitrary>], iteration_bounds = array<i64: 2, 1>, scalar_prefetch = 0 : i64, scratch_operands = 1 : i64, tpu.core_type = #tpu.core_type<tc>, window_params = [{pipeline_mode = #tpu.pipeline_mode<synchronous>, transform_indices = @transform_0, window_bounds = array<i64: 8, 1024>}, {transform_indices = @transform_1, window_bounds = array<i64: 1024, 128>}, {transform_indices = @transform_2, window_bounds = array<i64: 8, 128>}, {transform_indices = @transform_3, window_bounds = array<i64: 1, 8, 1>}]} {
    %c0_i32 = arith.constant 0 : i32
    %0 = arith.cmpi eq, %arg1, %c0_i32 : i32
    %1 = arith.extui %0 : i1 to i32
    %c0_i32_0 = arith.constant 0 : i32
    %2 = arith.cmpi ne, %1, %c0_i32_0 : i32
    scf.if %2 {
      %cst_9 = arith.constant 0.000000e+00 : f32
      %15 = vector.broadcast %cst_9 : f32 to vector<8x128xf32>
      %c0_10 = arith.constant 0 : index
      %c0_11 = arith.constant 0 : index
      %16 = vector.load %arg6[%c0_10, %c0_11] : memref<8x128xf32, #tpu.memory_space<vmem>>, vector<8x128xf32>
      tpu.vector_store %arg6[%c0_10, %c0_11], %15 {strides = array<i32>} : memref<8x128xf32, #tpu.memory_space<vmem>>, vector<8x128xf32>,
    } else {
    }
    %c1024_i32 = arith.constant 1024 : i32
    %3 = arith.muli %arg1, %c1024_i32 : i32
    %4 = tpu.assume_multiple %3, 1024 : i32
    %c0 = arith.constant 0 : index
    %5 = arith.index_cast %4 : i32 to index
    %6 = vector.load %arg2[%c0, %5] : memref<8x1024xf32, #tpu.memory_space<vmem>>, vector<8x1024xf32>
    %c0_1 = arith.constant 0 : index
    %c0_2 = arith.constant 0 : index
    %7 = vector.load %arg6[%c0_1, %c0_2] : memref<8x128xf32, #tpu.memory_space<vmem>>, vector<8x128xf32>
    %c0_3 = arith.constant 0 : index
    %c0_4 = arith.constant 0 : index
    %8 = vector.load %arg3[%c0_3, %c0_4] : memref<1024x128xf32, #tpu.memory_space<vmem>>, vector<1024x128xf32>
    %cst = arith.constant dense<0.000000e+00> : vector<8x128xf32>
    %9 = tpu.matmul %6, %8, %cst {dimension_numbers = #tpu.dot_dimension_numbers<[1], [0], [0], [1], [0, 0, 1, 1], [], []>} : vector<8x1024xf32>, vector<1024x128xf32>, vector<8x128xf32> -> vector<8x128xf32>
    %10 = arith.addf %7, %9 : vector<8x128xf32>
    %c0_5 = arith.constant 0 : index
    %c0_6 = arith.constant 0 : index
    %11 = vector.load %arg6[%c0_5, %c0_6] : memref<8x128xf32, #tpu.memory_space<vmem>>, vector<8x128xf32>
    tpu.vector_store %arg6[%c0_5, %c0_6], %10 {strides = array<i32>} : memref<8x128xf32, #tpu.memory_space<vmem>>, vector<8x128xf32>,
    %c0_i32_7 = arith.constant 0 : i32
    %12 = arith.cmpi eq, %arg1, %c0_i32_7 : i32
    %13 = arith.extui %12 : i1 to i32
    %c0_i32_8 = arith.constant 0 : i32
    %14 = arith.cmpi ne, %13, %c0_i32_8 : i32
    scf.if %14 {
      %c0_9 = arith.constant 0 : index
      %c0_10 = arith.constant 0 : index
      %15 = vector.load %arg6[%c0_9, %c0_10] : memref<8x128xf32, #tpu.memory_space<vmem>>, vector<8x128xf32>
      %c0_11 = arith.constant 0 : index
      %c0_12 = arith.constant 0 : index
      %16 = vector.load %arg4[%c0_11, %c0_12] : memref<8x128xf32, #tpu.memory_space<vmem>>, vector<8x128xf32>
      %17 = arith.subf %15, %16 : vector<8x128xf32>
      %18 = arith.mulf %17, %17 : vector<8x128xf32>
      %cst_13 = arith.constant dense<0.000000e+00> : vector<8xf32>
      %19 = vector.multi_reduction <add>, %18, %cst_13 [1] : vector<8x128xf32> to vector<8xf32>
      %20 = vector.shape_cast %19 : vector<8xf32> to vector<8x1xf32>
      %cst_14 = arith.constant 5.000000e-01 : f32
      %21 = vector.broadcast %cst_14 : f32 to vector<8x1xf32>
      %22 = arith.mulf %21, %20 : vector<8x1xf32>
      %23 = vector.shape_cast %22 : vector<8x1xf32> to vector<1x8x1xf32>
      %c0_15 = arith.constant 0 : index
      %c0_16 = arith.constant 0 : index
      %c0_17 = arith.constant 0 : index
      %24 = vector.load %arg5[%c0_15, %c0_16, %c0_17] : memref<1x8x1xf32, #tpu.memory_space<vmem>>, vector<1x8x1xf32>
      tpu.vector_store %arg5[%c0_15, %c0_16, %c0_17], %23 {strides = array<i32>} : memref<1x8x1xf32, #tpu.memory_space<vmem>>, vector<1x8x1xf32>,
    } else {
    }
    return
  }
  func.func @transform_0(%arg0: i32, %arg1: i32) -> (i32, i32) {
    %c0_i32 = arith.constant 0 : i32
    %c0_i32_0 = arith.constant 0 : i32
    %c0_i32_1 = arith.constant 0 : i32
    return %c0_i32, %c0_i32_0 : i32, i32
  }
  func.func @transform_1(%arg0: i32, %arg1: i32) -> (i32, i32) {
    %c0_i32 = arith.constant 0 : i32
    return %arg1, %arg0 : i32, i32
  }
  func.func @transform_2(%arg0: i32, %arg1: i32) -> (i32, i32) {
    %c0_i32 = arith.constant 0 : i32
    %c0_i32_0 = arith.constant 0 : i32
    return %c0_i32, %arg0 : i32, i32
  }
  func.func @transform_3(%arg0: i32, %arg1: i32) -> (i32, i32, i32) {
    %c0_i32 = arith.constant 0 : i32
    %c0_i32_0 = arith.constant 0 : i32
    %c0_i32_1 = arith.constant 0 : i32
    return %arg0, %c0_i32, %c0_i32_0 : i32, i32, i32
  }
}

</mosaic_0001>

<llo_original>
// kernel: tpu_custom_call.1
$region0: #{tpu_custom_call.1}
  #allocation0 [shape = 'u32[]', space=smem, size = 0x4, offset = 0x4, fixed_abs, tag = 'smem constant byte address 0x4 - core index']
  #allocation1 [shape = 'u32[144,128]{1,0:T(1,128)}', space=vmem, size = 0x12000, scoped, tag = 'internal scratch']
  #allocation2 [shape = 'f32[8,128]{1,0:T(8,128)}', space=vmem, size = 0x1000, scoped, tag = 'scratch operand']
  %s0 = inlined_call_operand.hbm [shape: f32[8,1024], index: 0, kind: input, shape index: {}]
  %s1 = inlined_call_operand.hbm [shape: f32[1024,256], index: 1, kind: input, shape index: {}]
  %s2 = inlined_call_operand.hbm [shape: f32[8,256], index: 2, kind: input, shape index: {}]
  %s3 = inlined_call_operand.vmem [shape: f32[2,8,1], index: 3, kind: output, shape index: {}]
  %s4 = sld [smem:[#allocation0]]
  $region65: #{tpu_custom_call.1} parent=0
    _
  %s6 = ssub.s32 1, %s4
  %s7 = scalar_select 0, %s6, %s4
  $region1: #{tpu_custom_call.1} parent=0
    #allocation3 [shape = 'u8[32768]{0}', space=vmem, size = 0x8000, scoped, tag = 'input window, operand 0, single buffered']
    #allocation4 [shape = 's32[2]{0}', space=sflag, size = 0x8, scoped, tag = 'scoped memory for tpu_custom_call.1']
    #allocation5 [shape = 'u8[1048576]{0}', space=vmem, size = 0x100000, scoped, tag = 'input window, operand 1']
    #allocation6 [shape = 's32[2]{0}', space=sflag, size = 0x8, scoped, tag = 'scoped memory for tpu_custom_call.1']
    #allocation7 [shape = 'u8[8192]{0}', space=vmem, size = 0x2000, scoped, tag = 'input window, operand 2']
    %8 = vsyncpa [#allocation4], 0
    %9 = vsyncpa [#allocation6], 0
    %s10 = scalar_lea.sflag [#allocation6], 1
    %11 = vsyncpa %s10, 0
    loop: start=0, step=1, limit=4
    $region2: #{tpu_custom_call.1} parent=1 // loop_pre_header
      _
    $region3: #{tpu_custom_call.1} parent=1 // loop_header
      %s13 = sphi 0, %s17
      %p14 = scmp.ge.s32.totalorder %s13, 4
      %s20 = sphi 0, %s32
      %s21 = sphi 0, %s28
      %s22 = sphi 0, %s20
      %s23 = sphi 0, %s21
      %s24 = sphi 0, %s22
      %s25 = sphi 0, %s23
      %s33 = sphi 0, %s33
      %s35 = sphi 0, %s33
      %s36 = sphi 0, %s35
      %s50 = sphi 0, %s36
      %s58 = sphi 0, %s60
      %s61 = sphi 0, %s58
      %s62 = sphi 0, %s61
      %s78 = sphi 0, %s62
      %s84 = sphi 0, %s86
      %s87 = sphi 0, %s84
      %s88 = sphi 0, %s87
      %s104 = sphi 0, %s88
      %s110 = sphi 0, %s112
      %s113 = sphi 0, %s110
      %s114 = sphi 0, %s113
      %s130 = sphi 0, %s114
    $region4: #{tpu_custom_call.1} parent=1 // loop_header_branch
      %16 = sbr.rel (%p14) target = $region8
    $region5: #{tpu_custom_call.1} parent=1 // loop_body
      %s18 = ssub.s32 %s13, 1
      %s19 = ssub.s32 %s13, 2
      %s26 = sadd.s32 1, %s21
      %p27 = scmp.ge.s32.totalorder %s26, 1
      %s28 = scalar_select %p27, 0, %s26
      %s29 = sadd.s32 1, %s20
      %s30 = scalar_select %p27, %s29, %s20
      %p31 = scmp.ge.s32.totalorder %s30, 2
      %s32 = scalar_select %p31, 0, %s30
      %s34 = sadd.s32 %s33, 1
      %p37 = scmp.eq.s32.totalorder %s13, 1
      %p38 = scmp.ne.s32.totalorder %s33, %s35
      %p39 = scmp.eq.s32.totalorder %s13, 0
      %p40 = por %p38, %p39
      %p41 = scmp.ne.s32.totalorder %s33, %s35
      %p42 = scmp.eq.s32.totalorder %s18, 1
      %p43 = por %p41, %p42
      %p44 = scmp.ne.s32.totalorder %s35, %s36
      %p45 = scmp.eq.s32.totalorder %s18, 0
      %p46 = por %p44, %p45
      %p47 = scmp.ne.s32.totalorder %s35, %s36
      %p48 = scmp.eq.s32.totalorder %s19, 1
      %p49 = por %p47, %p48
      %p51 = scmp.ne.s32.totalorder %s36, %s50
      %p52 = scmp.eq.s32.totalorder %s19, 0
      %p53 = por %p51, %p52
      %s54 = ssub.s32 %s21, %s28
      %s55 = ssub.s32 %s20, %s32
      %s56 = sor.u32 %s54, %s55
      %p57 = scmp.eq.s32.totalorder %s56, 0
      %s59 = sadd.s32 %s58, 1
      %s60 = scalar_select %p57, %s58, %s59
      %p63 = pneg %p57
      %p64 = scmp.eq.s32.totalorder %s13, 1
      %p65 = por %p63, %p64
      %p66 = scmp.ne.s32.totalorder %s58, %s61
      %p67 = scmp.eq.s32.totalorder %s13, 0
      %p68 = por %p66, %p67
      %p69 = scmp.ne.s32.totalorder %s58, %s61
      %p70 = scmp.eq.s32.totalorder %s18, 1
      %p71 = por %p69, %p70
      %p72 = scmp.ne.s32.totalorder %s61, %s62
      %p73 = scmp.eq.s32.totalorder %s18, 0
      %p74 = por %p72, %p73
      %p75 = scmp.ne.s32.totalorder %s61, %s62
      %p76 = scmp.eq.s32.totalorder %s19, 1
      %p77 = por %p75, %p76
      %p79 = scmp.ne.s32.totalorder %s62, %s78
      %p80 = scmp.eq.s32.totalorder %s19, 0
      %p81 = por %p79, %p80
      %s82 = ssub.s32 %s20, %s32
      %p83 = scmp.eq.s32.totalorder %s82, 0
      %s85 = sadd.s32 %s84, 1
      %s86 = scalar_select %p83, %s84, %s85
      %p89 = pneg %p83
      %p90 = scmp.eq.s32.totalorder %s13, 1
      %p91 = por %p89, %p90
      %p92 = scmp.ne.s32.totalorder %s84, %s87
      %p93 = scmp.eq.s32.totalorder %s13, 0
      %p94 = por %p92, %p93
      %p95 = scmp.ne.s32.totalorder %s84, %s87
      %p96 = scmp.eq.s32.totalorder %s18, 1
      %p97 = por %p95, %p96
      %p98 = scmp.ne.s32.totalorder %s87, %s88
      %p99 = scmp.eq.s32.totalorder %s18, 0
      %p100 = por %p98, %p99
      %p101 = scmp.ne.s32.totalorder %s87, %s88
      %p102 = scmp.eq.s32.totalorder %s19, 1
      %p103 = por %p101, %p102
      %p105 = scmp.ne.s32.totalorder %s88, %s104
      %p106 = scmp.eq.s32.totalorder %s19, 0
      %p107 = por %p105, %p106
      %s108 = ssub.s32 %s20, %s32
      %p109 = scmp.eq.s32.totalorder %s108, 0
      %s111 = sadd.s32 %s110, 1
      %s112 = scalar_select %p109, %s110, %s111
      %p115 = pneg %p109
      %p116 = scmp.eq.s32.totalorder %s13, 1
      %p117 = por %p115, %p116
      %p118 = scmp.ne.s32.totalorder %s110, %s113
      %p119 = scmp.eq.s32.totalorder %s13, 0
      %p120 = por %p118, %p119
      %p121 = scmp.ne.s32.totalorder %s110, %s113
      %p122 = scmp.eq.s32.totalorder %s18, 1
      %p123 = por %p121, %p122
      %p124 = scmp.ne.s32.totalorder %s113, %s114
      %p125 = scmp.eq.s32.totalorder %s18, 0
      %p126 = por %p124, %p125
      %p127 = scmp.ne.s32.totalorder %s113, %s114
      %p128 = scmp.eq.s32.totalorder %s19, 1
      %p129 = por %p127, %p128
      %p131 = scmp.ne.s32.totalorder %s114, %s130
      %p132 = scmp.eq.s32.totalorder %s19, 0
      %p133 = por %p131, %p132
      %p134 = scmp.le.s32.totalorder 1, %s13
      %p135 = scmp.lt.s32.totalorder %s13, 3
      %p136 = pnand %p134, %p135
      %p137 = pneg %p136
      // Predicated region
      $region9: #{tpu_custom_call.1} parent=5 // pred_check
        _
      $region10: #{tpu_custom_call.1} parent=5 // pred_check_branch
        %139 = sbr.rel (%p136) target = $region12
      $region11: #{tpu_custom_call.1} parent=5 // pred_region
        %s140 = ssub.s32 %s13, 1
        // Predicated region
        $region13: #{tpu_custom_call.1} parent=11 // pred_check
          %p141 = pneg %p46
        $region14: #{tpu_custom_call.1} parent=11 // pred_check_branch
          %143 = sbr.rel (%p141) target = $region16
        $region15: #{tpu_custom_call.1} parent=11 // pred_region
          %s145 = ssub.s32 1024, 1024
          %146 = vsyncadd [#allocation4], %s145
          %s148 = sshll.u32 [#allocation3], 4
          %s149 = int_to_ptr.vmem [resolvable:$true] %s148
          %151 = dma.hbm_to_vmem [thread:$0]  %s0, 1024, %s149, [#allocation4]
        $region16: #{tpu_custom_call.1} parent=11 // pred_fallthru
          _
      $region12: #{tpu_custom_call.1} parent=5 // pred_fallthru
        _
      %p152 = scmp.lt.s32.totalorder %s13, 2
      // Predicated region
      $region17: #{tpu_custom_call.1} parent=5 // pred_check
        %p153 = pneg %p152
      $region18: #{tpu_custom_call.1} parent=5 // pred_check_branch
        %155 = sbr.rel (%p153) target = $region20
      $region19: #{tpu_custom_call.1} parent=5 // pred_region
        // Predicated region
        $region21: #{tpu_custom_call.1} parent=19 // pred_check
          %p156 = pneg %p68
        $region22: #{tpu_custom_call.1} parent=19 // pred_check_branch
          %158 = sbr.rel (%p156) target = $region24
        $region23: #{tpu_custom_call.1} parent=19 // pred_region
          %s159 = sand.u32 %s13, 1
          %s160 = scalar_lea.sflag [#allocation6], %s159
          %s161 = sand.u32 %s58, 1
          %s162 = smul.addr %s161, 1024
          %s163 = scalar_lea.vmem [#allocation5], %s162
          %s164 = smul.u32 128, %s21
          %s166 = ssub.s32 16384, 16384
          %167 = vsyncadd %s160, %s166
          %s168 = smul.addr %s164, 2
          %s169 = sadd.s32 %s20, %s168
          %s170 = smul.addr %s169, 128
          %s171 = scalar_lea.hbm %s1, %s170
          %s172 = sshll.u32 %s163, 4
          %s173 = int_to_ptr.vmem [resolvable:$true] %s172
          %178 = dma.hbm_to_vmem [thread:$0]  %s171, 16384, %s173, %s160, 256, 128, 8
        $region24: #{tpu_custom_call.1} parent=19 // pred_fallthru
          _
        // Predicated region
        $region25: #{tpu_custom_call.1} parent=19 // pred_check
          %p179 = pneg %p94
        $region26: #{tpu_custom_call.1} parent=19 // pred_check_branch
          %181 = sbr.rel (%p179) target = $region28
        $region27: #{tpu_custom_call.1} parent=19 // pred_region
          %s182 = sand.u32 %s13, 1
          %s183 = scalar_lea.sflag [#allocation6], %s182
          %s184 = sand.u32 %s84, 1
          %s185 = smul.addr %s184, 8
          %s186 = scalar_lea.vmem [#allocation7], %s185
          %s188 = ssub.s32 128, 128
          %189 = vsyncadd %s183, %s188
          %s190 = smul.addr %s20, 128
          %s191 = scalar_lea.hbm %s2, %s190
          %s193 = sshll.u32 %s186, 4
          %s194 = int_to_ptr.vmem [resolvable:$true] %s193
          %196 = dma.hbm_to_vmem [thread:$0]  %s191, 128, %s194, %s183
        $region28: #{tpu_custom_call.1} parent=19 // pred_fallthru
          _
      $region20: #{tpu_custom_call.1} parent=5 // pred_fallthru
        _
      %p197 = scmp.le.s32.totalorder 1, %s13
      %p198 = scmp.lt.s32.totalorder %s13, 3
      %p199 = pnand %p197, %p198
      %p200 = pneg %p199
      // Predicated region
      $region29: #{tpu_custom_call.1} parent=5 // pred_check
        _
      $region30: #{tpu_custom_call.1} parent=5 // pred_check_branch
        %202 = sbr.rel (%p199) target = $region32
      $region31: #{tpu_custom_call.1} parent=5 // pred_region
        %s203 = ssub.s32 %s13, 1
        // Predicated region
        $region33: #{tpu_custom_call.1} parent=31 // pred_check
          %p204 = pneg %p46
        $region34: #{tpu_custom_call.1} parent=31 // pred_check_branch
          %206 = sbr.rel (%p204) target = $region36
        $region35: #{tpu_custom_call.1} parent=31 // pred_region
          %207 = dma.done [#allocation4], 1024
        $region36: #{tpu_custom_call.1} parent=31 // pred_fallthru
          _
        %s208 = sand.u32 %s18, 1
        %s209 = scalar_lea.sflag [#allocation6], %s208
        %s210 = sand.u32 %s61, 1
        %s211 = smul.addr %s210, 1024
        %s212 = scalar_lea.vmem [#allocation5], %s211
        // Predicated region
        $region37: #{tpu_custom_call.1} parent=31 // pred_check
          %p213 = pneg %p74
        $region38: #{tpu_custom_call.1} parent=31 // pred_check_branch
          %215 = sbr.rel (%p213) target = $region40
        $region39: #{tpu_custom_call.1} parent=31 // pred_region
          %216 = dma.done %s209, 16384
        $region40: #{tpu_custom_call.1} parent=31 // pred_fallthru
          _
        %s217 = sand.u32 %s18, 1
        %s218 = scalar_lea.sflag [#allocation6], %s217
        %s219 = sand.u32 %s87, 1
        %s220 = smul.addr %s219, 8
        %s221 = scalar_lea.vmem [#allocation7], %s220
        // Predicated region
        $region41: #{tpu_custom_call.1} parent=31 // pred_check
          %p222 = pneg %p100
        $region42: #{tpu_custom_call.1} parent=31 // pred_check_branch
          %224 = sbr.rel (%p222) target = $region44
        $region43: #{tpu_custom_call.1} parent=31 // pred_region
          %225 = dma.done %s218, 128
        $region44: #{tpu_custom_call.1} parent=31 // pred_fallthru
          _
        %p226 = pneg %p46
        %p227 = pneg %p43
        %s228 = sand.u32 %s18, 1
        %s229 = scalar_lea.sflag [#allocation6], %s228
        %s230 = sand.u32 %s61, 1
        %s231 = smul.addr %s230, 1024
        %s232 = scalar_lea.vmem [#allocation5], %s231
        %p233 = pneg %p74
        %p234 = pneg %p71
        %s235 = sand.u32 %s18, 1
        %s236 = scalar_lea.sflag [#allocation6], %s235
        %s237 = sand.u32 %s87, 1
        %s238 = smul.addr %s237, 8
        %s239 = scalar_lea.vmem [#allocation7], %s238
        %p240 = pneg %p100
        %p241 = pneg %p97
        %p242 = pneg %p126
        %p243 = pneg %p123
        %p244 = scmp.lt.s32.totalorder %s22, 1
        %s245 = scalar_select %p244, %s22, 1
        %s246 = smul.addr %s245, 8
        %s247 = scalar_lea.vmem %s3, %s246
        %s248 = smul.u32 128, %s23
        %p249 = scmp.lt.s32.totalorder %s22, 1
        %s250 = scalar_select %p249, %s22, 1
        %s251 = smul.addr %s250, 8
        %s252 = scalar_lea.vmem %s3, %s251
        %p253 = scmp.eq.s32.totalorder %s23, 0
        // Predicated region
        $region45: #{tpu_custom_call.1} parent=31 // pred_check
          %p254 = pneg %p253
        $region46: #{tpu_custom_call.1} parent=31 // pred_check_branch
          %256 = sbr.rel (%p254) target = $region48
        $region47: #{tpu_custom_call.1} parent=31 // pred_region
          %257 = vst [vmem:[#allocation2] sm:$0xff] 0.0
        $region48: #{tpu_custom_call.1} parent=31 // pred_fallthru
          _
        %s258 = smul.u32 %s23, 1024
        %s259 = sshra.s32 %s258, 7
        %s260 = sand.u32 %s258, 127
        %s261 = smul.addr %s259, 8
        %s262 = scalar_lea.vmem [#allocation3], %s261
        %v263 = vld [vmem:[%s262] sm:$0xff]
        %v264 = vld [vmem:[%s262 + $0x8] sm:$0xff]
        %v265 = vld [vmem:[%s262 + $0x10] sm:$0xff]
        %v266 = vld [vmem:[%s262 + $0x18] sm:$0xff]
        %v267 = vld [vmem:[%s262 + $0x20] sm:$0xff]
        %v268 = vld [vmem:[%s262 + $0x28] sm:$0xff]
        %v269 = vld [vmem:[%s262 + $0x30] sm:$0xff]
        %v270 = vld [vmem:[%s262 + $0x38] sm:$0xff]
        %v271 = vld [vmem:[#allocation2] sm:$0xff]
        %v272 = vld [vmem:[%s212] sm:$0xff]
        %v273 = vld [vmem:[%s212 + $0x8] sm:$0xff]
        %v274 = vld [vmem:[%s212 + $0x10] sm:$0xff]
        %v275 = vld [vmem:[%s212 + $0x18] sm:$0xff]
        %v276 = vld [vmem:[%s212 + $0x20] sm:$0xff]
        %v277 = vld [vmem:[%s212 + $0x28] sm:$0xff]
        %v278 = vld [vmem:[%s212 + $0x30] sm:$0xff]
        %v279 = vld [vmem:[%s212 + $0x38] sm:$0xff]
        %v280 = vld [vmem:[%s212 + $0x40] sm:$0xff]
        %v281 = vld [vmem:[%s212 + $0x48] sm:$0xff]
        %v282 = vld [vmem:[%s212 + $0x50] sm:$0xff]
        %v283 = vld [vmem:[%s212 + $0x58] sm:$0xff]
        %v284 = vld [vmem:[%s212 + $0x60] sm:$0xff]
        %v285 = vld [vmem:[%s212 + $0x68] sm:$0xff]
        %v286 = vld [vmem:[%s212 + $0x70] sm:$0xff]
        %v287 = vld [vmem:[%s212 + $0x78] sm:$0xff]
        %v288 = vld [vmem:[%s212 + $0x80] sm:$0xff]
        %v289 = vld [vmem:[%s212 + $0x88] sm:$0xff]
        %v290 = vld [vmem:[%s212 + $0x90] sm:$0xff]
        %v291 = vld [vmem:[%s212 + $0x98] sm:$0xff]
        %v292 = vld [vmem:[%s212 + $0xa0] sm:$0xff]
        %v293 = vld [vmem:[%s212 + $0xa8] sm:$0xff]
        %v294 = vld [vmem:[%s212 + $0xb0] sm:$0xff]
        %v295 = vld [vmem:[%s212 + $0xb8] sm:$0xff]
        %v296 = vld [vmem:[%s212 + $0xc0] sm:$0xff]
        %v297 = vld [vmem:[%s212 + $0xc8] sm:$0xff]
        %v298 = vld [vmem:[%s212 + $0xd0] sm:$0xff]
        %v299 = vld [vmem:[%s212 + $0xd8] sm:$0xff]
        %v300 = vld [vmem:[%s212 + $0xe0] sm:$0xff]
        %v301 = vld [vmem:[%s212 + $0xe8] sm:$0xff]
        %v302 = vld [vmem:[%s212 + $0xf0] sm:$0xff]
        %v303 = vld [vmem:[%s212 + $0xf8] sm:$0xff]
        %v304 = vld [vmem:[%s212 + $0x100] sm:$0xff]
        %v305 = vld [vmem:[%s212 + $0x108] sm:$0xff]
        %v306 = vld [vmem:[%s212 + $0x110] sm:$0xff]
        %v307 = vld [vmem:[%s212 + $0x118] sm:$0xff]
        %v308 = vld [vmem:[%s212 + $0x120] sm:$0xff]
        %v309 = vld [vmem:[%s212 + $0x128] sm:$0xff]
        %v310 = vld [vmem:[%s212 + $0x130] sm:$0xff]
        %v311 = vld [vmem:[%s212 + $0x138] sm:$0xff]
        %v312 = vld [vmem:[%s212 + $0x140] sm:$0xff]
        %v313 = vld [vmem:[%s212 + $0x148] sm:$0xff]
        %v314 = vld [vmem:[%s212 + $0x150] sm:$0xff]
        %v315 = vld [vmem:[%s212 + $0x158] sm:$0xff]
        %v316 = vld [vmem:[%s212 + $0x160] sm:$0xff]
        %v317 = vld [vmem:[%s212 + $0x168] sm:$0xff]
        %v318 = vld [vmem:[%s212 + $0x170] sm:$0xff]
        %v319 = vld [vmem:[%s212 + $0x178] sm:$0xff]
        %v320 = vld [vmem:[%s212 + $0x180] sm:$0xff]
        %v321 = vld [vmem:[%s212 + $0x188] sm:$0xff]
        %v322 = vld [vmem:[%s212 + $0x190] sm:$0xff]
        %v323 = vld [vmem:[%s212 + $0x198] sm:$0xff]
        %v324 = vld [vmem:[%s212 + $0x1a0] sm:$0xff]
        %v325 = vld [vmem:[%s212 + $0x1a8] sm:$0xff]
        %v326 = vld [vmem:[%s212 + $0x1b0] sm:$0xff]
        %v327 = vld [vmem:[%s212 + $0x1b8] sm:$0xff]
        %v328 = vld [vmem:[%s212 + $0x1c0] sm:$0xff]
        %v329 = vld [vmem:[%s212 + $0x1c8] sm:$0xff]
        %v330 = vld [vmem:[%s212 + $0x1d0] sm:$0xff]
        %v331 = vld [vmem:[%s212 + $0x1d8] sm:$0xff]
        %v332 = vld [vmem:[%s212 + $0x1e0] sm:$0xff]
        %v333 = vld [vmem:[%s212 + $0x1e8] sm:$0xff]
        %v334 = vld [vmem:[%s212 + $0x1f0] sm:$0xff]
        %v335 = vld [vmem:[%s212 + $0x1f8] sm:$0xff]
        %v336 = vld [vmem:[%s212 + $0x200] sm:$0xff]
        %v337 = vld [vmem:[%s212 + $0x208] sm:$0xff]
        %v338 = vld [vmem:[%s212 + $0x210] sm:$0xff]
        %v339 = vld [vmem:[%s212 + $0x218] sm:$0xff]
        %v340 = vld [vmem:[%s212 + $0x220] sm:$0xff]
        %v341 = vld [vmem:[%s212 + $0x228] sm:$0xff]
        %v342 = vld [vmem:[%s212 + $0x230] sm:$0xff]
        %v343 = vld [vmem:[%s212 + $0x238] sm:$0xff]
        %v344 = vld [vmem:[%s212 + $0x240] sm:$0xff]
        %v345 = vld [vmem:[%s212 + $0x248] sm:$0xff]
        %v346 = vld [vmem:[%s212 + $0x250] sm:$0xff]
        %v347 = vld [vmem:[%s212 + $0x258] sm:$0xff]
        %v348 = vld [vmem:[%s212 + $0x260] sm:$0xff]
        %v349 = vld [vmem:[%s212 + $0x268] sm:$0xff]
        %v350 = vld [vmem:[%s212 + $0x270] sm:$0xff]
        %v351 = vld [vmem:[%s212 + $0x278] sm:$0xff]
        %v352 = vld [vmem:[%s212 + $0x280] sm:$0xff]
        %v353 = vld [vmem:[%s212 + $0x288] sm:$0xff]
        %v354 = vld [vmem:[%s212 + $0x290] sm:$0xff]
        %v355 = vld [vmem:[%s212 + $0x298] sm:$0xff]
        %v356 = vld [vmem:[%s212 + $0x2a0] sm:$0xff]
        %v357 = vld [vmem:[%s212 + $0x2a8] sm:$0xff]
        %v358 = vld [vmem:[%s212 + $0x2b0] sm:$0xff]
        %v359 = vld [vmem:[%s212 + $0x2b8] sm:$0xff]
        %v360 = vld [vmem:[%s212 + $0x2c0] sm:$0xff]
        %v361 = vld [vmem:[%s212 + $0x2c8] sm:$0xff]
        %v362 = vld [vmem:[%s212 + $0x2d0] sm:$0xff]
        %v363 = vld [vmem:[%s212 + $0x2d8] sm:$0xff]
        %v364 = vld [vmem:[%s212 + $0x2e0] sm:$0xff]
        %v365 = vld [vmem:[%s212 + $0x2e8] sm:$0xff]
        %v366 = vld [vmem:[%s212 + $0x2f0] sm:$0xff]
        %v367 = vld [vmem:[%s212 + $0x2f8] sm:$0xff]
        %v368 = vld [vmem:[%s212 + $0x300] sm:$0xff]
        %v369 = vld [vmem:[%s212 + $0x308] sm:$0xff]
        %v370 = vld [vmem:[%s212 + $0x310] sm:$0xff]
        %v371 = vld [vmem:[%s212 + $0x318] sm:$0xff]
        %v372 = vld [vmem:[%s212 + $0x320] sm:$0xff]
        %v373 = vld [vmem:[%s212 + $0x328] sm:$0xff]
        %v374 = vld [vmem:[%s212 + $0x330] sm:$0xff]
        %v375 = vld [vmem:[%s212 + $0x338] sm:$0xff]
        %v376 = vld [vmem:[%s212 + $0x340] sm:$0xff]
        %v377 = vld [vmem:[%s212 + $0x348] sm:$0xff]
        %v378 = vld [vmem:[%s212 + $0x350] sm:$0xff]
        %v379 = vld [vmem:[%s212 + $0x358] sm:$0xff]
        %v380 = vld [vmem:[%s212 + $0x360] sm:$0xff]
        %v381 = vld [vmem:[%s212 + $0x368] sm:$0xff]
        %v382 = vld [vmem:[%s212 + $0x370] sm:$0xff]
        %v383 = vld [vmem:[%s212 + $0x378] sm:$0xff]
        %v384 = vld [vmem:[%s212 + $0x380] sm:$0xff]
        %v385 = vld [vmem:[%s212 + $0x388] sm:$0xff]
        %v386 = vld [vmem:[%s212 + $0x390] sm:$0xff]
        %v387 = vld [vmem:[%s212 + $0x398] sm:$0xff]
        %v388 = vld [vmem:[%s212 + $0x3a0] sm:$0xff]
        %v389 = vld [vmem:[%s212 + $0x3a8] sm:$0xff]
        %v390 = vld [vmem:[%s212 + $0x3b0] sm:$0xff]
        %v391 = vld [vmem:[%s212 + $0x3b8] sm:$0xff]
        %v392 = vld [vmem:[%s212 + $0x3c0] sm:$0xff]
        %v393 = vld [vmem:[%s212 + $0x3c8] sm:$0xff]
        %v394 = vld [vmem:[%s212 + $0x3d0] sm:$0xff]
        %v395 = vld [vmem:[%s212 + $0x3d8] sm:$0xff]
        %v396 = vld [vmem:[%s212 + $0x3e0] sm:$0xff]
        %v397 = vld [vmem:[%s212 + $0x3e8] sm:$0xff]
        %v398 = vld [vmem:[%s212 + $0x3f0] sm:$0xff]
        %v399 = vld [vmem:[%s212 + $0x3f8] sm:$0xff]
        %400 = vmatprep.subr.mxu0 0.0
        %401 = vmatpush1.msra.mxu0 %v272
        %402 = vmatprep.subr.mxu0 0.0
        %403 = vmatpush1.msra.mxu0 %v273
        %404 = vmatprep.subr.mxu0 0.0
        %405 = vmatpush1.msra.mxu0 %v274
        %406 = vmatprep.subr.mxu0 0.0
        %407 = vmatpush1.msra.mxu0 %v275
        %408 = vmatprep.subr.mxu0 0.0
        %409 = vmatpush1.msra.mxu0 %v276
        %410 = vmatprep.subr.mxu0 0.0
        %411 = vmatpush1.msra.mxu0 %v277
        %412 = vmatprep.subr.mxu0 0.0
        %413 = vmatpush1.msra.mxu0 %v278
        %414 = vmatprep.subr.mxu0 0.0
        %415 = vmatpush1.msra.mxu0 %v279
        %416 = vmatprep.subr.mxu0 0.0
        %417 = vmatpush1.msra.mxu0 %v280
        %418 = vmatprep.subr.mxu0 0.0
        %419 = vmatpush1.msra.mxu0 %v281
        %420 = vmatprep.subr.mxu0 0.0
        %421 = vmatpush1.msra.mxu0 %v282
        %422 = vmatprep.subr.mxu0 0.0
        %423 = vmatpush1.msra.mxu0 %v283
        %424 = vmatprep.subr.mxu0 0.0
        %425 = vmatpush1.msra.mxu0 %v284
        %426 = vmatprep.subr.mxu0 0.0
        %427 = vmatpush1.msra.mxu0 %v285
        %428 = vmatprep.subr.mxu0 0.0
        %429 = vmatpush1.msra.mxu0 %v286
        %430 = vmatprep.subr.mxu0 0.0
        %431 = vmatpush1.msra.mxu0 %v287
        %432 = vmatprep.subr.mxu0 0.0
        %433 = vmatpush1.msra.mxu0 %v288
        %434 = vmatprep.subr.mxu0 0.0
        %435 = vmatpush1.msra.mxu0 %v289
        %436 = vmatprep.subr.mxu0 0.0
        %437 = vmatpush1.msra.mxu0 %v290
        %438 = vmatprep.subr.mxu0 0.0
        %439 = vmatpush1.msra.mxu0 %v291
        %440 = vmatprep.subr.mxu0 0.0
        %441 = vmatpush1.msra.mxu0 %v292
        %442 = vmatprep.subr.mxu0 0.0
        %443 = vmatpush1.msra.mxu0 %v293
        %444 = vmatprep.subr.mxu0 0.0
        %445 = vmatpush1.msra.mxu0 %v294
        %446 = vmatprep.subr.mxu0 0.0
        %447 = vmatpush1.msra.mxu0 %v295
        %448 = vmatprep.subr.mxu0 0.0
        %449 = vmatpush1.msra.mxu0 %v296
        %450 = vmatprep.subr.mxu0 0.0
        %451 = vmatpush1.msra.mxu0 %v297
        %452 = vmatprep.subr.mxu0 0.0
        %453 = vmatpush1.msra.mxu0 %v298
        %454 = vmatprep.subr.mxu0 0.0
        %455 = vmatpush1.msra.mxu0 %v299
        %456 = vmatprep.subr.mxu0 0.0
        %457 = vmatpush1.msra.mxu0 %v300
        %458 = vmatprep.subr.mxu0 0.0
        %459 = vmatpush1.msra.mxu0 %v301
        %460 = vmatprep.subr.mxu0 0.0
        %461 = vmatpush1.msra.mxu0 %v302
        %462 = vmatprep.subr.mxu0 0.0
        %463 = vmatpush1.msra.mxu0 %v303
        %464 = vmatprep.mubr.f32.mxu0 %v264
        %465 = vmatmul.mubr.f32.gmra.mrb[0].mxu0 %v263
        %v466 = vpop.f32.mrb[0].mxu0
        %v467 = vadd.f32 0.0, %v466
        %v468 = vpop.f32.mrb[0].mxu0
        %469 = vdwg.mxu0
        %470 = vmatprep.subr.mxu0 0.0
        %471 = vmatpush1.msra.mxu0 %v304
        %472 = vmatprep.subr.mxu0 0.0
        %473 = vmatpush1.msra.mxu0 %v305
        %474 = vmatprep.subr.mxu0 0.0
        %475 = vmatpush1.msra.mxu0 %v306
        %476 = vmatprep.subr.mxu0 0.0
        %477 = vmatpush1.msra.mxu0 %v307
        %478 = vmatprep.subr.mxu0 0.0
        %479 = vmatpush1.msra.mxu0 %v308
        %480 = vmatprep.subr.mxu0 0.0
        %481 = vmatpush1.msra.mxu0 %v309
        %482 = vmatprep.subr.mxu0 0.0
        %483 = vmatpush1.msra.mxu0 %v310
        %484 = vmatprep.subr.mxu0 0.0
        %485 = vmatpush1.msra.mxu0 %v311
        %486 = vmatprep.subr.mxu0 0.0
        %487 = vmatpush1.msra.mxu0 %v312
        %488 = vmatprep.subr.mxu0 0.0
        %489 = vmatpush1.msra.mxu0 %v313
        %490 = vmatprep.subr.mxu0 0.0
        %491 = vmatpush1.msra.mxu0 %v314
        %492 = vmatprep.subr.mxu0 0.0
        %493 = vmatpush1.msra.mxu0 %v315
        %494 = vmatprep.subr.mxu0 0.0
        %495 = vmatpush1.msra.mxu0 %v316
        %496 = vmatprep.subr.mxu0 0.0
        %497 = vmatpush1.msra.mxu0 %v317
        %498 = vmatprep.subr.mxu0 0.0
        %499 = vmatpush1.msra.mxu0 %v318
        %500 = vmatprep.subr.mxu0 0.0
        %501 = vmatpush1.msra.mxu0 %v319
        %502 = vmatprep.subr.mxu0 0.0
        %503 = vmatpush1.msra.mxu0 %v320
        %504 = vmatprep.subr.mxu0 0.0
        %505 = vmatpush1.msra.mxu0 %v321
        %506 = vmatprep.subr.mxu0 0.0
        %507 = vmatpush1.msra.mxu0 %v322
        %508 = vmatprep.subr.mxu0 0.0
        %509 = vmatpush1.msra.mxu0 %v323
        %510 = vmatprep.subr.mxu0 0.0
        %511 = vmatpush1.msra.mxu0 %v324
        %512 = vmatprep.subr.mxu0 0.0
        %513 = vmatpush1.msra.mxu0 %v325
        %514 = vmatprep.subr.mxu0 0.0
        %515 = vmatpush1.msra.mxu0 %v326
        %516 = vmatprep.subr.mxu0 0.0
        %517 = vmatpush1.msra.mxu0 %v327
        %518 = vmatprep.subr.mxu0 0.0
        %519 = vmatpush1.msra.mxu0 %v328
        %520 = vmatprep.subr.mxu0 0.0
        %521 = vmatpush1.msra.mxu0 %v329
        %522 = vmatprep.subr.mxu0 0.0
        %523 = vmatpush1.msra.mxu0 %v330
        %524 = vmatprep.subr.mxu0 0.0
        %525 = vmatpush1.msra.mxu0 %v331
        %526 = vmatprep.subr.mxu0 0.0
        %527 = vmatpush1.msra.mxu0 %v332
        %528 = vmatprep.subr.mxu0 0.0
        %529 = vmatpush1.msra.mxu0 %v333
        %530 = vmatprep.subr.mxu0 0.0
        %531 = vmatpush1.msra.mxu0 %v334
        %532 = vmatprep.subr.mxu0 0.0
        %533 = vmatpush1.msra.mxu0 %v335
        %534 = vmatprep.mubr.f32.mxu0 %v266
        %535 = vmatmul.mubr.f32.gmra.mrb[0].mxu0 %v265
        %v536 = vpop.f32.mrb[0].mxu0
        %v537 = vadd.f32 %v467, %v536
        %v538 = vpop.f32.mrb[0].mxu0
        %539 = vdwg.mxu0
        %540 = vmatprep.subr.mxu0 0.0
        %541 = vmatpush1.msra.mxu0 %v336
        %542 = vmatprep.subr.mxu0 0.0
        %543 = vmatpush1.msra.mxu0 %v337
        %544 = vmatprep.subr.mxu0 0.0
        %545 = vmatpush1.msra.mxu0 %v338
        %546 = vmatprep.subr.mxu0 0.0
        %547 = vmatpush1.msra.mxu0 %v339
        %548 = vmatprep.subr.mxu0 0.0
        %549 = vmatpush1.msra.mxu0 %v340
        %550 = vmatprep.subr.mxu0 0.0
        %551 = vmatpush1.msra.mxu0 %v341
        %552 = vmatprep.subr.mxu0 0.0
        %553 = vmatpush1.msra.mxu0 %v342
        %554 = vmatprep.subr.mxu0 0.0
        %555 = vmatpush1.msra.mxu0 %v343
        %556 = vmatprep.subr.mxu0 0.0
        %557 = vmatpush1.msra.mxu0 %v344
        %558 = vmatprep.subr.mxu0 0.0
        %559 = vmatpush1.msra.mxu0 %v345
        %560 = vmatprep.subr.mxu0 0.0
        %561 = vmatpush1.msra.mxu0 %v346
        %562 = vmatprep.subr.mxu0 0.0
        %563 = vmatpush1.msra.mxu0 %v347
        %564 = vmatprep.subr.mxu0 0.0
        %565 = vmatpush1.msra.mxu0 %v348
        %566 = vmatprep.subr.mxu0 0.0
        %567 = vmatpush1.msra.mxu0 %v349
        %568 = vmatprep.subr.mxu0 0.0
        %569 = vmatpush1.msra.mxu0 %v350
        %570 = vmatprep.subr.mxu0 0.0
        %571 = vmatpush1.msra.mxu0 %v351
        %572 = vmatprep.subr.mxu0 0.0
        %573 = vmatpush1.msra.mxu0 %v352
        %574 = vmatprep.subr.mxu0 0.0
        %575 = vmatpush1.msra.mxu0 %v353
        %576 = vmatprep.subr.mxu0 0.0
        %577 = vmatpush1.msra.mxu0 %v354
        %578 = vmatprep.subr.mxu0 0.0
        %579 = vmatpush1.msra.mxu0 %v355
        %580 = vmatprep.subr.mxu0 0.0
        %581 = vmatpush1.msra.mxu0 %v356
        %582 = vmatprep.subr.mxu0 0.0
        %583 = vmatpush1.msra.mxu0 %v357
        %584 = vmatprep.subr.mxu0 0.0
        %585 = vmatpush1.msra.mxu0 %v358
        %586 = vmatprep.subr.mxu0 0.0
        %587 = vmatpush1.msra.mxu0 %v359
        %588 = vmatprep.subr.mxu0 0.0
        %589 = vmatpush1.msra.mxu0 %v360
        %590 = vmatprep.subr.mxu0 0.0
        %591 = vmatpush1.msra.mxu0 %v361
        %592 = vmatprep.subr.mxu0 0.0
        %593 = vmatpush1.msra.mxu0 %v362
        %594 = vmatprep.subr.mxu0 0.0
        %595 = vmatpush1.msra.mxu0 %v363
        %596 = vmatprep.subr.mxu0 0.0
        %597 = vmatpush1.msra.mxu0 %v364
        %598 = vmatprep.subr.mxu0 0.0
        %599 = vmatpush1.msra.mxu0 %v365
        %600 = vmatprep.subr.mxu0 0.0
        %601 = vmatpush1.msra.mxu0 %v366
        %602 = vmatprep.subr.mxu0 0.0
        %603 = vmatpush1.msra.mxu0 %v367
        %604 = vmatprep.mubr.f32.mxu0 %v268
        %605 = vmatmul.mubr.f32.gmra.mrb[0].mxu0 %v267
        %v606 = vpop.f32.mrb[0].mxu0
        %v607 = vadd.f32 %v537, %v606
        %v608 = vpop.f32.mrb[0].mxu0
        %609 = vdwg.mxu0
        %610 = vmatprep.subr.mxu0 0.0
        %611 = vmatpush1.msra.mxu0 %v368
        %612 = vmatprep.subr.mxu0 0.0
        %613 = vmatpush1.msra.mxu0 %v369
        %614 = vmatprep.subr.mxu0 0.0
        %615 = vmatpush1.msra.mxu0 %v370
        %616 = vmatprep.subr.mxu0 0.0
        %617 = vmatpush1.msra.mxu0 %v371
        %618 = vmatprep.subr.mxu0 0.0
        %619 = vmatpush1.msra.mxu0 %v372
        %620 = vmatprep.subr.mxu0 0.0
        %621 = vmatpush1.msra.mxu0 %v373
        %622 = vmatprep.subr.mxu0 0.0
        %623 = vmatpush1.msra.mxu0 %v374
        %624 = vmatprep.subr.mxu0 0.0
        %625 = vmatpush1.msra.mxu0 %v375
        %626 = vmatprep.subr.mxu0 0.0
        %627 = vmatpush1.msra.mxu0 %v376
        %628 = vmatprep.subr.mxu0 0.0
        %629 = vmatpush1.msra.mxu0 %v377
        %630 = vmatprep.subr.mxu0 0.0
        %631 = vmatpush1.msra.mxu0 %v378
        %632 = vmatprep.subr.mxu0 0.0
        %633 = vmatpush1.msra.mxu0 %v379
        %634 = vmatprep.subr.mxu0 0.0
        %635 = vmatpush1.msra.mxu0 %v380
        %636 = vmatprep.subr.mxu0 0.0
        %637 = vmatpush1.msra.mxu0 %v381
        %638 = vmatprep.subr.mxu0 0.0
        %639 = vmatpush1.msra.mxu0 %v382
        %640 = vmatprep.subr.mxu0 0.0
        %641 = vmatpush1.msra.mxu0 %v383
        %642 = vmatprep.subr.mxu0 0.0
        %643 = vmatpush1.msra.mxu0 %v384
        %644 = vmatprep.subr.mxu0 0.0
        %645 = vmatpush1.msra.mxu0 %v385
        %646 = vmatprep.subr.mxu0 0.0
        %647 = vmatpush1.msra.mxu0 %v386
        %648 = vmatprep.subr.mxu0 0.0
        %649 = vmatpush1.msra.mxu0 %v387
        %650 = vmatprep.subr.mxu0 0.0
        %651 = vmatpush1.msra.mxu0 %v388
        %652 = vmatprep.subr.mxu0 0.0
        %653 = vmatpush1.msra.mxu0 %v389
        %654 = vmatprep.subr.mxu0 0.0
        %655 = vmatpush1.msra.mxu0 %v390
        %656 = vmatprep.subr.mxu0 0.0
        %657 = vmatpush1.msra.mxu0 %v391
        %658 = vmatprep.subr.mxu0 0.0
        %659 = vmatpush1.msra.mxu0 %v392
        %660 = vmatprep.subr.mxu0 0.0
        %661 = vmatpush1.msra.mxu0 %v393
        %662 = vmatprep.subr.mxu0 0.0
        %663 = vmatpush1.msra.mxu0 %v394
        %664 = vmatprep.subr.mxu0 0.0
        %665 = vmatpush1.msra.mxu0 %v395
        %666 = vmatprep.subr.mxu0 0.0
        %667 = vmatpush1.msra.mxu0 %v396
        %668 = vmatprep.subr.mxu0 0.0
        %669 = vmatpush1.msra.mxu0 %v397
        %670 = vmatprep.subr.mxu0 0.0
        %671 = vmatpush1.msra.mxu0 %v398
        %672 = vmatprep.subr.mxu0 0.0
        %673 = vmatpush1.msra.mxu0 %v399
        %674 = vmatprep.mubr.f32.mxu0 %v270
        %675 = vmatmul.mubr.f32.gmra.mrb[0].mxu0 %v269
        %v676 = vpop.f32.mrb[0].mxu0
        %v677 = vadd.f32 %v607, %v676
        %v678 = vpop.f32.mrb[0].mxu0
        %679 = vdwg.mxu0
        %v680 = vadd.f32 %v271, %v677
        %681 = vst [vmem:[#allocation2] sm:$0xff] %v680
        // Predicated region
        $region49: #{tpu_custom_call.1} parent=31 // pred_check
          %p682 = pneg %p253
        $region50: #{tpu_custom_call.1} parent=31 // pred_check_branch
          %684 = sbr.rel (%p682) target = $region52
        $region51: #{tpu_custom_call.1} parent=31 // pred_region
          %v685 = vld [vmem:[#allocation2] sm:$0xff]
          %v686 = vld [vmem:[%s221] sm:$0xff]
          %v687 = vsub.f32 %v685, %v686
          %v688 = vmul.f32 %v687, %v687
          %689 = vadd.xlane.f32.xlu0 %v688
          %v690 = vpop.xlane.xlu0 %689
          %v691 = vmul.f32 %v690, 0.5
          %vm692 = vcmask 7168
          %693 = vst.msk [vmem:[%s252] sm:$0xff] %vm692, %v691
        $region52: #{tpu_custom_call.1} parent=31 // pred_fallthru
          _
        %p694 = scmp.lt.s32.totalorder %s22, 1
        %s695 = scalar_select %p694, %s22, 1
        %s696 = smul.addr %s695, 8
        %s697 = scalar_lea.vmem %s3, %s696
        // Predicated region
        $region53: #{tpu_custom_call.1} parent=31 // pred_check
          %p698 = pneg %p123
        $region54: #{tpu_custom_call.1} parent=31 // pred_check_branch
          %700 = sbr.rel (%p698) target = $region56
        $region55: #{tpu_custom_call.1} parent=31 // pred_region
          _
        $region56: #{tpu_custom_call.1} parent=31 // pred_fallthru
          _
      $region32: #{tpu_custom_call.1} parent=5 // pred_fallthru
        _
      %p701 = scmp.le.s32.totalorder 2, %s13
      // Predicated region
      $region57: #{tpu_custom_call.1} parent=5 // pred_check
        %p702 = pneg %p701
      $region58: #{tpu_custom_call.1} parent=5 // pred_check_branch
        %704 = sbr.rel (%p702) target = $region60
      $region59: #{tpu_custom_call.1} parent=5 // pred_region
        %s705 = ssub.s32 %s13, 2
        // Predicated region
        $region61: #{tpu_custom_call.1} parent=59 // pred_check
          %p706 = pneg %p129
        $region62: #{tpu_custom_call.1} parent=59 // pred_check_branch
          %708 = sbr.rel (%p706) target = $region64
        $region63: #{tpu_custom_call.1} parent=59 // pred_region
          %p709 = scmp.lt.s32.totalorder %s24, 1
          %s710 = scalar_select %p709, %s24, 1
          %s711 = smul.addr %s710, 8
          %s712 = scalar_lea.vmem %s3, %s711
        $region64: #{tpu_custom_call.1} parent=59 // pred_fallthru
          _
      $region60: #{tpu_custom_call.1} parent=5 // pred_fallthru
        _
    $region6: #{tpu_custom_call.1} parent=1 // loop_footer
      %s17 = sadd.s32 1, %s13
    $region7: #{tpu_custom_call.1} parent=1 // loop_footer_branch
      %12 = sbr.rel target = $region3
    $region8: #{tpu_custom_call.1} parent=1 // loop_exit
      _
    %713 = vsyncpa [#allocation4], 1
    %s714 = scalar_lea.sflag [#allocation4], 1
    %715 = vsyncpa %s714, 1
    %716 = vsyncpa [#allocation6], 1
    %s717 = scalar_lea.sflag [#allocation6], 1
    %718 = vsyncpa %s717, 1

</llo_original>
